<compile_context>
chip_gen: v6e
topology: v6e:2x2x1
jax: 0.10.0
libtpu: 0.0.40
codegen_flags: <defaults>
</compile_context>

<pallas_src>
import jax
import jax.numpy as jnp
from jax import lax
from jax.experimental import pallas as pl
from jax.experimental.pallas import tpu as pltpu


def _style_loss_kernel(fsrc_ref, ftgt_ref, out_ref, g_src_ref, g_tgt_ref):
    """One (batch, hw-split, hw-tile) grid cell.

    Accumulates partial (unnormalized) Gram matrices for src/tgt into the two
    (C, C) f32 scratch accumulators; on the last HW tile of this split writes
    the partial Gram difference (additive across splits) to the output block.
    """
    k = pl.program_id(2)

    @pl.when(k == 0)
    def _():
        g_src_ref[...] = jnp.zeros_like(g_src_ref)
        g_tgt_ref[...] = jnp.zeros_like(g_tgt_ref)

    fs = fsrc_ref[0]  # (C, tile_hw), native input dtype
    ft = ftgt_ref[0]  # (C, tile_hw), native input dtype

    # Contract the last (HW) dim of both operands directly on the MXU
    # (no explicit transpose / relayout), accumulate in f32.
    dn = (((1,), (1,)), ((), ()))
    g_src_ref[...] += lax.dot_general(
        fs, fs, dimension_numbers=dn, preferred_element_type=jnp.float32)
    g_tgt_ref[...] += lax.dot_general(
        ft, ft, dimension_numbers=dn, preferred_element_type=jnp.float32)

    @pl.when(k == pl.num_programs(2) - 1)
    def _():
        out_ref[...] = (g_src_ref[...] - g_tgt_ref[...])[None, None]


def _vmem_limit_bytes():
    """Chip-aware scoped-VMEM limit: ~75% of physical, capped at 96 MiB.

    -> ~96 MiB on v5e/v6e (128 MiB physical), ~48 MiB on v7x (64 MiB per TC).
    """
    try:
        cap = int(pltpu.get_tpu_info().vmem_capacity_bytes)
    except Exception:
        cap = 64 * 1024 * 1024  # conservative fallback (v7x per-core VMEM)
    return min((cap * 3) // 4, 96 * 1024 * 1024)


def _plan_hw_tile(hw_pad, c, itemsize, n_split, vmem_limit, max_tile_hw=None):
    """Largest 128-multiple tile_hw dividing each split's HW range such that
    2 inputs x 2 pipeline buffers (+ scratch + output block) fit vmem_limit."""
    n128 = hw_pad // 128
    n_per_split = n128 // n_split

    # Fixed residents: two f32 (C,C) Gram accumulators + a double-buffered
    # f32 (C,C) output block, plus slack for Mosaic internal scratch.
    fixed = 4 * c * c * 4 + (2 << 20)
    input_budget = max(vmem_limit - fixed, 1 << 20)
    # Input pipeline buffers: 2 inputs x 2 buffers x C rows x itemsize/lane.
    budget_lanes = max(128, input_budget // (4 * c * itemsize))

    g_cap = max(1, min(budget_lanes // 128, n_per_split))
    if max_tile_hw is not None:
        g_cap = max(1, min(g_cap, max(1, max_tile_hw // 128)))
    g = 1
    for cand in range(g_cap, 0, -1):
        if n_per_split % cand == 0:
            g = cand
            break
    return 128 * g, n_per_split // g


def style_loss(featmap_src_T, featmap_tgt_S, *, max_tile_hw=None):
    """Pallas implementation of StyleLoss.forward.

    featmap_src_T, featmap_tgt_S: (B, C, H, W) arrays (NCHW), f32 or bf16.
    Returns scalar f32 == F.mse_loss(G_src/(H*W), G_tgt/(H*W)).
    """
    B, C, H, W = featmap_src_T.shape
    HW = H * W

    # Keep the native dtype end-to-end (no f32 upcast: kernel is HBM-bound).
    f_src = featmap_src_T.reshape(B, C, HW)
    f_tgt = featmap_tgt_S.reshape(B, C, HW)
    itemsize = f_src.dtype.itemsize

    # Split the HW reduction across two 'parallel' grid slots when B == 1 so
    # both v7x TensorCores have work (harmless on single-TC chips; partial
    # Gram differences are additive across splits).
    n_split = 2 if (B == 1 and HW >= 256) else 1

    # Zero-pad HW to a multiple of 128 * n_split; zero columns contribute
    # nothing to a Gram matrix, so this is exact.
    pad_to = 128 * n_split
    hw_pad = int(pl.cdiv(HW, pad_to)) * pad_to
    if hw_pad != HW:
        pad = ((0, 0), (0, 0), (0, hw_pad - HW))
        f_src = jnp.pad(f_src, pad)
        f_tgt = jnp.pad(f_tgt, pad)

    vmem_limit = _vmem_limit_bytes()
    tile_hw, n_k = _plan_hw_tile(hw_pad, C, itemsize, n_split, vmem_limit,
                                 max_tile_hw)

    # TODO(synk): very large C (Gram + output blocks alone exceeding the v7x
    # VMEM budget) would additionally need C-tiling of the Gram matrices.
    gram_diff = pl.pallas_call(
        _style_loss_kernel,
        out_shape=jax.ShapeDtypeStruct((B, n_split, C, C), jnp.float32),
        grid_spec=pltpu.PrefetchScalarGridSpec(
            num_scalar_prefetch=0,
            grid=(B, n_split, n_k),
            in_specs=[
                pl.BlockSpec((1, C, tile_hw),
                             lambda b, s, k: (b, 0, s * n_k + k)),
                pl.BlockSpec((1, C, tile_hw),
                             lambda b, s, k: (b, 0, s * n_k + k)),
            ],
            out_specs=pl.BlockSpec((1, 1, C, C),
                                   lambda b, s, k: (b, s, 0, 0)),
            scratch_shapes=[
                pltpu.VMEM((C, C), jnp.float32),
                pltpu.VMEM((C, C), jnp.float32),
            ],
        ),
        compiler_params=pltpu.CompilerParams(
            dimension_semantics=("parallel", "parallel", "arbitrary"),
            vmem_limit_bytes=vmem_limit,
        ),
    )(f_src, f_tgt)

    # Sum partial Gram differences over splits, then MSE with the 1/HW Gram
    # normalization folded in: mean over B*C*C elements of ((G_s - G_t)/HW)^2.
    diff = jnp.sum(gram_diff, axis=1)  # (B, C, C), f32
    inv_hw = 1.0 / float(HW)
    loss = jnp.sum(diff * diff) * (inv_hw * inv_hw) / float(B * C * C)
    return loss.astype(jnp.float32)


def _reference_style_loss(featmap_src_T, featmap_tgt_S):
    # Pure-JAX reference mirroring the PyTorch module (f32 math).
    B, C, H, W = featmap_src_T.shape
    f_src = featmap_src_T.reshape(B, C, H * W).astype(jnp.float32)
    f_tgt = featmap_tgt_S.reshape(B, C, H * W).astype(jnp.float32)
    A_src = jnp.einsum("bch,bdh->bcd", f_src, f_src) / (H * W)
    A_tgt = jnp.einsum("bch,bdh->bcd", f_tgt, f_tgt) / (H * W)
    return jnp.mean((A_src - A_tgt) ** 2)


if __name__ == "__main__":
    key = jax.random.PRNGKey(0)
    k1, k2, k3, k4, k5, k6 = jax.random.split(key, 6)

    # Test 1: small f32 case matching the module spec (single HW tile).
    B, C, H, W = 2, 4, 16, 16
    src = jax.random.normal(k1, (B, C, H, W), dtype=jnp.float32)
    tgt = jax.random.normal(k2, (B, C, H, W), dtype=jnp.float32)
    loss = jax.block_until_ready(style_loss(src, tgt))
    ref = jax.block_until_ready(_reference_style_loss(src, tgt))
    assert jnp.allclose(loss, ref, rtol=1e-5, atol=1e-5), (loss, ref)

    # Test 2: HW not a multiple of 128 (zero-pad path) + multi-tile
    # accumulation (forced small tile).
    B2, C2, H2, W2 = 2, 8, 30, 30
    src2 = jax.random.normal(k3, (B2, C2, H2, W2), dtype=jnp.float32)
    tgt2 = jax.random.normal(k4, (B2, C2, H2, W2), dtype=jnp.float32)
    loss2 = jax.block_until_ready(style_loss(src2, tgt2, max_tile_hw=256))
    ref2 = jax.block_until_ready(_reference_style_loss(src2, tgt2))
    assert jnp.allclose(loss2, ref2, rtol=1e-5, atol=1e-5), (loss2, ref2)

    # Test 3: B == 1 (HW-split across the parallel axis) with bf16 inputs
    # fed directly to the MXU (f32 accumulation).
    B3, C3, H3, W3 = 1, 16, 32, 32
    src3 = jax.random.normal(k5, (B3, C3, H3, W3), dtype=jnp.bfloat16)
    tgt3 = jax.random.normal(k6, (B3, C3, H3, W3), dtype=jnp.bfloat16)
    loss3 = jax.block_until_ready(style_loss(src3, tgt3, max_tile_hw=256))
    ref3 = jax.block_until_ready(_reference_style_loss(src3, tgt3))
    assert jnp.allclose(loss3, ref3, rtol=2e-3, atol=2e-3), (loss3, ref3)

    print("KERNEL_OK")
</pallas_src>

<mosaic_0001>
module attributes {stable_mosaic.version = 11 : i64} {
  func.func @_style_loss_kernel(%arg0: i32, %arg1: i32, %arg2: i32, %arg3: memref<1x4x256xf32, #tpu.memory_space<vmem>>, %arg4: memref<1x4x256xf32, #tpu.memory_space<vmem>>, %arg5: memref<1x1x4x4xf32, #tpu.memory_space<vmem>>, %arg6: memref<4x4xf32, #tpu.memory_space<vmem>>, %arg7: memref<4x4xf32, #tpu.memory_space<vmem>>) attributes {dimension_semantics = [#tpu.dimension_semantics<parallel>, #tpu.dimension_semantics<parallel>, #tpu.dimension_semantics<arbitrary>], iteration_bounds = array<i64: 2, 1, 1>, scalar_prefetch = 0 : i64, scratch_operands = 2 : i64, tpu.core_type = #tpu.core_type<tc>, window_params = [{transform_indices = @transform_0, window_bounds = array<i64: 1, 4, 256>}, {transform_indices = @transform_1, window_bounds = array<i64: 1, 4, 256>}, {transform_indices = @transform_2, window_bounds = array<i64: 1, 1, 4, 4>}]} {
    %c0_i32 = arith.constant 0 : i32
    %0 = arith.cmpi eq, %arg2, %c0_i32 : i32
    %1 = arith.extui %0 : i1 to i32
    %c0_i32_0 = arith.constant 0 : i32
    %2 = arith.cmpi ne, %1, %c0_i32_0 : i32
    scf.if %2 {
      %cst_17 = arith.constant 0.000000e+00 : f32
      %18 = vector.broadcast %cst_17 : f32 to vector<4x4xf32>
      %c0_18 = arith.constant 0 : index
      %c0_19 = arith.constant 0 : index
      %19 = vector.load %arg6[%c0_18, %c0_19] : memref<4x4xf32, #tpu.memory_space<vmem>>, vector<4x4xf32>
      tpu.vector_store %arg6[%c0_18, %c0_19], %18 {strides = array<i32>} : memref<4x4xf32, #tpu.memory_space<vmem>>, vector<4x4xf32>,
      %cst_20 = arith.constant 0.000000e+00 : f32
      %20 = vector.broadcast %cst_20 : f32 to vector<4x4xf32>
      %c0_21 = arith.constant 0 : index
      %c0_22 = arith.constant 0 : index
      %21 = vector.load %arg7[%c0_21, %c0_22] : memref<4x4xf32, #tpu.memory_space<vmem>>, vector<4x4xf32>
      tpu.vector_store %arg7[%c0_21, %c0_22], %20 {strides = array<i32>} : memref<4x4xf32, #tpu.memory_space<vmem>>, vector<4x4xf32>,
    } else {
    }
    %c0 = arith.constant 0 : index
    %c0_1 = arith.constant 0 : index
    %c0_2 = arith.constant 0 : index
    %3 = vector.load %arg3[%c0, %c0_1, %c0_2] : memref<1x4x256xf32, #tpu.memory_space<vmem>>, vector<1x4x256xf32>
    %4 = vector.shape_cast %3 : vector<1x4x256xf32> to vector<4x256xf32>
    %c0_3 = arith.constant 0 : index
    %c0_4 = arith.constant 0 : index
    %c0_5 = arith.constant 0 : index
    %5 = vector.load %arg4[%c0_3, %c0_4, %c0_5] : memref<1x4x256xf32, #tpu.memory_space<vmem>>, vector<1x4x256xf32>
    %6 = vector.shape_cast %5 : vector<1x4x256xf32> to vector<4x256xf32>
    %c0_6 = arith.constant 0 : index
    %c0_7 = arith.constant 0 : index
    %7 = vector.load %arg6[%c0_6, %c0_7] : memref<4x4xf32, #tpu.memory_space<vmem>>, vector<4x4xf32>
    %cst = arith.constant dense<0.000000e+00> : vector<4x4xf32>
    %8 = tpu.matmul %4, %4, %cst {dimension_numbers = #tpu.dot_dimension_numbers<[1], [1], [0], [0], [0, 0, 1, 0], [], []>} : vector<4x256xf32>, vector<4x256xf32>, vector<4x4xf32> -> vector<4x4xf32>
    %9 = arith.addf %7, %8 : vector<4x4xf32>
    %c0_8 = arith.constant 0 : index
    %c0_9 = arith.constant 0 : index
    %10 = vector.load %arg6[%c0_8, %c0_9] : memref<4x4xf32, #tpu.memory_space<vmem>>, vector<4x4xf32>
    tpu.vector_store %arg6[%c0_8, %c0_9], %9 {strides = array<i32>} : memref<4x4xf32, #tpu.memory_space<vmem>>, vector<4x4xf32>,
    %c0_10 = arith.constant 0 : index
    %c0_11 = arith.constant 0 : index
    %11 = vector.load %arg7[%c0_10, %c0_11] : memref<4x4xf32, #tpu.memory_space<vmem>>, vector<4x4xf32>
    %cst_12 = arith.constant dense<0.000000e+00> : vector<4x4xf32>
    %12 = tpu.matmul %6, %6, %cst_12 {dimension_numbers = #tpu.dot_dimension_numbers<[1], [1], [0], [0], [0, 0, 1, 0], [], []>} : vector<4x256xf32>, vector<4x256xf32>, vector<4x4xf32> -> vector<4x4xf32>
    %13 = arith.addf %11, %12 : vector<4x4xf32>
    %c0_13 = arith.constant 0 : index
    %c0_14 = arith.constant 0 : index
    %14 = vector.load %arg7[%c0_13, %c0_14] : memref<4x4xf32, #tpu.memory_space<vmem>>, vector<4x4xf32>
    tpu.vector_store %arg7[%c0_13, %c0_14], %13 {strides = array<i32>} : memref<4x4xf32, #tpu.memory_space<vmem>>, vector<4x4xf32>,
    %c0_i32_15 = arith.constant 0 : i32
    %15 = arith.cmpi eq, %arg2, %c0_i32_15 : i32
    %16 = arith.extui %15 : i1 to i32
    %c0_i32_16 = arith.constant 0 : i32
    %17 = arith.cmpi ne, %16, %c0_i32_16 : i32
    scf.if %17 {
      %c0_17 = arith.constant 0 : index
      %c0_18 = arith.constant 0 : index
      %18 = vector.load %arg6[%c0_17, %c0_18] : memref<4x4xf32, #tpu.memory_space<vmem>>, vector<4x4xf32>
      %c0_19 = arith.constant 0 : index
      %c0_20 = arith.constant 0 : index
      %19 = vector.load %arg7[%c0_19, %c0_20] : memref<4x4xf32, #tpu.memory_space<vmem>>, vector<4x4xf32>
      %20 = arith.subf %18, %19 : vector<4x4xf32>
      %21 = vector.shape_cast %20 : vector<4x4xf32> to vector<1x1x4x4xf32>
      %c0_21 = arith.constant 0 : index
      %c0_22 = arith.constant 0 : index
      %c0_23 = arith.constant 0 : index
      %c0_24 = arith.constant 0 : index
      %22 = vector.load %arg5[%c0_21, %c0_22, %c0_23, %c0_24] : memref<1x1x4x4xf32, #tpu.memory_space<vmem>>, vector<1x1x4x4xf32>
      tpu.vector_store %arg5[%c0_21, %c0_22, %c0_23, %c0_24], %21 {strides = array<i32>} : memref<1x1x4x4xf32, #tpu.memory_space<vmem>>, vector<1x1x4x4xf32>,
    } else {
    }
    return
  }
  func.func @transform_0(%arg0: i32, %arg1: i32, %arg2: i32) -> (i32, i32, i32) {
    %c1_i32 = arith.constant 1 : i32
    %0 = arith.muli %arg1, %c1_i32 : i32
    %1 = arith.addi %0, %arg2 : i32
    %c0_i32 = arith.constant 0 : i32
    %c0_i32_0 = arith.constant 0 : i32
    return %arg0, %c0_i32, %1 : i32, i32, i32
  }
  func.func @transform_1(%arg0: i32, %arg1: i32, %arg2: i32) -> (i32, i32, i32) {
    %c1_i32 = arith.constant 1 : i32
    %0 = arith.muli %arg1, %c1_i32 : i32
    %1 = arith.addi %0, %arg2 : i32
    %c0_i32 = arith.constant 0 : i32
    %c0_i32_0 = arith.constant 0 : i32
    return %arg0, %c0_i32, %1 : i32, i32, i32
  }
  func.func @transform_2(%arg0: i32, %arg1: i32, %arg2: i32) -> (i32, i32, i32, i32) {
    %c0_i32 = arith.constant 0 : i32
    %c0_i32_0 = arith.constant 0 : i32
    %c0_i32_1 = arith.constant 0 : i32
    return %arg0, %arg1, %c0_i32, %c0_i32_0 : i32, i32, i32, i32
  }
}

</mosaic_0001>

<llo_original>
// kernel: tpu_custom_call.1
$region0: #{tpu_custom_call.1}
  #allocation0 [shape = 'u32[]', space=smem, size = 0x4, offset = 0x4, fixed_abs, tag = 'smem constant byte address 0x4 - core index']
  #allocation1 [shape = 'u32[144,128]{1,0:T(1,128)}', space=vmem, size = 0x12000, scoped, tag = 'internal scratch']
  #allocation2 [shape = 'f32[4,4]{1,0:T(4,128)}', space=vmem, size = 0x800, scoped, tag = 'scratch operand']
  #allocation3 [shape = 'f32[4,4]{1,0:T(4,128)}', space=vmem, size = 0x800, scoped, tag = 'scratch operand']
  %s0 = inlined_call_operand.hbm [shape: f32[2,4,256], index: 0, kind: input, shape index: {}]
  %s1 = inlined_call_operand.hbm [shape: f32[2,4,256], index: 1, kind: input, shape index: {}]
  %s2 = inlined_call_operand.hbm [shape: f32[2,1,4,4], index: 2, kind: output, shape index: {}]
  %s3 = sld [smem:[#allocation0]]
  $region57: #{tpu_custom_call.1} parent=0
    _
  %s5 = ssub.s32 1, %s3
  %s6 = scalar_select 0, %s5, %s3
  $region1: #{tpu_custom_call.1} parent=0
    #allocation4 [shape = 'u8[8192]{0}', space=vmem, size = 0x2000, scoped, tag = 'input window, operand 0']
    #allocation5 [shape = 's32[2]{0}', space=sflag, size = 0x8, scoped, tag = 'scoped memory for tpu_custom_call.1']
    #allocation6 [shape = 's32[2]{0}', space=sflag, size = 0x8, scoped, tag = 'scoped memory for tpu_custom_call.1']
    #allocation7 [shape = 'u8[8192]{0}', space=vmem, size = 0x2000, scoped, tag = 'input window, operand 1']
    #allocation8 [shape = 's32[2]{0}', space=sflag, size = 0x8, scoped, tag = 'scoped memory for tpu_custom_call.1']
    #allocation9 [shape = 'u8[4096]{0}', space=vmem, size = 0x1000, scoped, tag = 'output window, operand 0']
    %7 = vsyncpa [#allocation5], 0
    %s8 = scalar_lea.sflag [#allocation5], 1
    %9 = vsyncpa %s8, 0
    %10 = vsyncpa [#allocation8], 0
    %s11 = scalar_lea.sflag [#allocation8], 1
    %12 = vsyncpa %s11, 0
    %13 = vsyncpa [#allocation6], 0
    %s14 = scalar_lea.sflag [#allocation6], 1
    %15 = vsyncpa %s14, 0
    loop: start=0, step=1, limit=4
    $region2: #{tpu_custom_call.1} parent=1 // loop_pre_header
      _
    $region3: #{tpu_custom_call.1} parent=1 // loop_header
      %s17 = sphi 0, %s21
      %p18 = scmp.ge.s32.totalorder %s17, 4
      %s24 = sphi 0, %s43
      %s25 = sphi 0, %s39
      %s26 = sphi 0, %s35
      %s27 = sphi 0, %s24
      %s28 = sphi 0, %s25
      %s29 = sphi 0, %s26
      %s30 = sphi 0, %s27
      %s31 = sphi 0, %s28
      %s32 = sphi 0, %s29
      %s50 = sphi 0, %s52
      %s53 = sphi 0, %s50
      %s54 = sphi 0, %s53
      %s70 = sphi 0, %s54
      %s80 = sphi 0, %s82
      %s83 = sphi 0, %s80
      %s84 = sphi 0, %s83
      %s100 = sphi 0, %s84
      %s108 = sphi 0, %s110
      %s111 = sphi 0, %s108
      %s112 = sphi 0, %s111
      %s128 = sphi 0, %s112
    $region4: #{tpu_custom_call.1} parent=1 // loop_header_branch
      %20 = sbr.rel (%p18) target = $region8
    $region5: #{tpu_custom_call.1} parent=1 // loop_body
      %s22 = ssub.s32 %s17, 1
      %s23 = ssub.s32 %s17, 2
      %s33 = sadd.s32 1, %s26
      %p34 = scmp.ge.s32.totalorder %s33, 1
      %s35 = scalar_select %p34, 0, %s33
      %s36 = sadd.s32 1, %s25
      %s37 = scalar_select %p34, %s36, %s25
      %p38 = scmp.ge.s32.totalorder %s37, 1
      %s39 = scalar_select %p38, 0, %s37
      %s40 = sadd.s32 1, %s24
      %s41 = scalar_select %p38, %s40, %s24
      %p42 = scmp.ge.s32.totalorder %s41, 2
      %s43 = scalar_select %p42, 0, %s41
      %s44 = sadd.s32 %s25, %s26
      %s45 = sadd.s32 %s39, %s35
      %s46 = ssub.s32 %s24, %s43
      %s47 = ssub.s32 %s44, %s45
      %s48 = sor.u32 %s46, %s47
      %p49 = scmp.eq.s32.totalorder %s48, 0
      %s51 = sadd.s32 %s50, 1
      %s52 = scalar_select %p49, %s50, %s51
      %p55 = pneg %p49
      %p56 = scmp.eq.s32.totalorder %s17, 1
      %p57 = por %p55, %p56
      %p58 = scmp.ne.s32.totalorder %s50, %s53
      %p59 = scmp.eq.s32.totalorder %s17, 0
      %p60 = por %p58, %p59
      %p61 = scmp.ne.s32.totalorder %s50, %s53
      %p62 = scmp.eq.s32.totalorder %s22, 1
      %p63 = por %p61, %p62
      %p64 = scmp.ne.s32.totalorder %s53, %s54
      %p65 = scmp.eq.s32.totalorder %s22, 0
      %p66 = por %p64, %p65
      %p67 = scmp.ne.s32.totalorder %s53, %s54
      %p68 = scmp.eq.s32.totalorder %s23, 1
      %p69 = por %p67, %p68
      %p71 = scmp.ne.s32.totalorder %s54, %s70
      %p72 = scmp.eq.s32.totalorder %s23, 0
      %p73 = por %p71, %p72
      %s74 = sadd.s32 %s25, %s26
      %s75 = sadd.s32 %s39, %s35
      %s76 = ssub.s32 %s24, %s43
      %s77 = ssub.s32 %s74, %s75
      %s78 = sor.u32 %s76, %s77
      %p79 = scmp.eq.s32.totalorder %s78, 0
      %s81 = sadd.s32 %s80, 1
      %s82 = scalar_select %p79, %s80, %s81
      %p85 = pneg %p79
      %p86 = scmp.eq.s32.totalorder %s17, 1
      %p87 = por %p85, %p86
      %p88 = scmp.ne.s32.totalorder %s80, %s83
      %p89 = scmp.eq.s32.totalorder %s17, 0
      %p90 = por %p88, %p89
      %p91 = scmp.ne.s32.totalorder %s80, %s83
      %p92 = scmp.eq.s32.totalorder %s22, 1
      %p93 = por %p91, %p92
      %p94 = scmp.ne.s32.totalorder %s83, %s84
      %p95 = scmp.eq.s32.totalorder %s22, 0
      %p96 = por %p94, %p95
      %p97 = scmp.ne.s32.totalorder %s83, %s84
      %p98 = scmp.eq.s32.totalorder %s23, 1
      %p99 = por %p97, %p98
      %p101 = scmp.ne.s32.totalorder %s84, %s100
      %p102 = scmp.eq.s32.totalorder %s23, 0
      %p103 = por %p101, %p102
      %s104 = ssub.s32 %s24, %s43
      %s105 = ssub.s32 %s25, %s39
      %s106 = sor.u32 %s104, %s105
      %p107 = scmp.eq.s32.totalorder %s106, 0
      %s109 = sadd.s32 %s108, 1
      %s110 = scalar_select %p107, %s108, %s109
      %p113 = pneg %p107
      %p114 = scmp.eq.s32.totalorder %s17, 1
      %p115 = por %p113, %p114
      %p116 = scmp.ne.s32.totalorder %s108, %s111
      %p117 = scmp.eq.s32.totalorder %s17, 0
      %p118 = por %p116, %p117
      %p119 = scmp.ne.s32.totalorder %s108, %s111
      %p120 = scmp.eq.s32.totalorder %s22, 1
      %p121 = por %p119, %p120
      %p122 = scmp.ne.s32.totalorder %s111, %s112
      %p123 = scmp.eq.s32.totalorder %s22, 0
      %p124 = por %p122, %p123
      %p125 = scmp.ne.s32.totalorder %s111, %s112
      %p126 = scmp.eq.s32.totalorder %s23, 1
      %p127 = por %p125, %p126
      %p129 = scmp.ne.s32.totalorder %s112, %s128
      %p130 = scmp.eq.s32.totalorder %s23, 0
      %p131 = por %p129, %p130
      %p132 = scmp.le.s32.totalorder 1, %s17
      %p133 = scmp.lt.s32.totalorder %s17, 3
      %p134 = pnand %p132, %p133
      %p135 = pneg %p134
      // Predicated region
      $region9: #{tpu_custom_call.1} parent=5 // pred_check
        _
      $region10: #{tpu_custom_call.1} parent=5 // pred_check_branch
        %137 = sbr.rel (%p134) target = $region12
      $region11: #{tpu_custom_call.1} parent=5 // pred_region
        %s138 = ssub.s32 %s17, 1
      $region12: #{tpu_custom_call.1} parent=5 // pred_fallthru
        _
      %p139 = scmp.lt.s32.totalorder %s17, 2
      // Predicated region
      $region13: #{tpu_custom_call.1} parent=5 // pred_check
        %p140 = pneg %p139
      $region14: #{tpu_custom_call.1} parent=5 // pred_check_branch
        %142 = sbr.rel (%p140) target = $region16
      $region15: #{tpu_custom_call.1} parent=5 // pred_region
        // Predicated region
        $region17: #{tpu_custom_call.1} parent=15 // pred_check
          %p143 = pneg %p60
        $region18: #{tpu_custom_call.1} parent=15 // pred_check_branch
          %145 = sbr.rel (%p143) target = $region20
        $region19: #{tpu_custom_call.1} parent=15 // pred_region
          %s146 = sand.u32 %s50, 1
          %s147 = scalar_lea.sflag [#allocation5], %s146
          %s148 = sand.u32 %s50, 1
          %s149 = smul.addr %s148, 8
          %s150 = scalar_lea.vmem [#allocation4], %s149
          %s151 = sadd.s32 %s25, %s26
          %s152 = smul.u32 2, %s151
          %s154 = ssub.s32 128, 128
          %155 = vsyncadd %s147, %s154
          %s156 = smul.addr %s24, 2
          %s157 = sadd.s32 %s152, %s156
          %s158 = smul.addr %s157, 64
          %s159 = scalar_lea.hbm %s0, %s158
          %s161 = sshll.u32 %s150, 4
          %s162 = int_to_ptr.vmem [resolvable:$true] %s161
          %164 = dma.hbm_to_vmem [thread:$0]  %s159, 128, %s162, %s147
        $region20: #{tpu_custom_call.1} parent=15 // pred_fallthru
          _
        // Predicated region
        $region21: #{tpu_custom_call.1} parent=15 // pred_check
          %p165 = pneg %p90
        $region22: #{tpu_custom_call.1} parent=15 // pred_check_branch
          %167 = sbr.rel (%p165) target = $region24
        $region23: #{tpu_custom_call.1} parent=15 // pred_region
          %s168 = sand.u32 %s80, 1
          %s169 = scalar_lea.sflag [#allocation8], %s168
          %s170 = sand.u32 %s80, 1
          %s171 = smul.addr %s170, 8
          %s172 = scalar_lea.vmem [#allocation7], %s171
          %s173 = sadd.s32 %s25, %s26
          %s174 = smul.u32 2, %s173
          %s176 = ssub.s32 128, 128
          %177 = vsyncadd %s169, %s176
          %s178 = smul.addr %s24, 2
          %s179 = sadd.s32 %s174, %s178
          %s180 = smul.addr %s179, 64
          %s181 = scalar_lea.hbm %s1, %s180
          %s183 = sshll.u32 %s172, 4
          %s184 = int_to_ptr.vmem [resolvable:$true] %s183
          %186 = dma.hbm_to_vmem [thread:$0]  %s181, 128, %s184, %s169
        $region24: #{tpu_custom_call.1} parent=15 // pred_fallthru
          _
      $region16: #{tpu_custom_call.1} parent=5 // pred_fallthru
        _
      %p187 = scmp.le.s32.totalorder 1, %s17
      %p188 = scmp.lt.s32.totalorder %s17, 3
      %p189 = pnand %p187, %p188
      %p190 = pneg %p189
      // Predicated region
      $region25: #{tpu_custom_call.1} parent=5 // pred_check
        _
      $region26: #{tpu_custom_call.1} parent=5 // pred_check_branch
        %192 = sbr.rel (%p189) target = $region28
      $region27: #{tpu_custom_call.1} parent=5 // pred_region
        %s193 = ssub.s32 %s17, 1
        %s194 = sand.u32 %s53, 1
        %s195 = scalar_lea.sflag [#allocation5], %s194
        %s196 = sand.u32 %s53, 1
        %s197 = smul.addr %s196, 8
        %s198 = scalar_lea.vmem [#allocation4], %s197
        // Predicated region
        $region29: #{tpu_custom_call.1} parent=27 // pred_check
          %p199 = pneg %p66
        $region30: #{tpu_custom_call.1} parent=27 // pred_check_branch
          %201 = sbr.rel (%p199) target = $region32
        $region31: #{tpu_custom_call.1} parent=27 // pred_region
          %202 = dma.done %s195, 128
        $region32: #{tpu_custom_call.1} parent=27 // pred_fallthru
          _
        %s203 = sand.u32 %s83, 1
        %s204 = scalar_lea.sflag [#allocation8], %s203
        %s205 = sand.u32 %s83, 1
        %s206 = smul.addr %s205, 8
        %s207 = scalar_lea.vmem [#allocation7], %s206
        // Predicated region
        $region33: #{tpu_custom_call.1} parent=27 // pred_check
          %p208 = pneg %p96
        $region34: #{tpu_custom_call.1} parent=27 // pred_check_branch
          %210 = sbr.rel (%p208) target = $region36
        $region35: #{tpu_custom_call.1} parent=27 // pred_region
          %211 = dma.done %s204, 128
        $region36: #{tpu_custom_call.1} parent=27 // pred_fallthru
          _
        %s212 = sand.u32 %s53, 1
        %s213 = scalar_lea.sflag [#allocation5], %s212
        %s214 = sand.u32 %s53, 1
        %s215 = smul.addr %s214, 8
        %s216 = scalar_lea.vmem [#allocation4], %s215
        %p217 = pneg %p66
        %p218 = pneg %p63
        %s219 = sand.u32 %s83, 1
        %s220 = scalar_lea.sflag [#allocation8], %s219
        %s221 = sand.u32 %s83, 1
        %s222 = smul.addr %s221, 8
        %s223 = scalar_lea.vmem [#allocation7], %s222
        %p224 = pneg %p96
        %p225 = pneg %p93
        %p226 = pneg %p124
        %p227 = pneg %p121
        %s228 = sand.u32 %s111, 1
        %s229 = scalar_lea.sflag [#allocation6], %s228
        %s230 = sand.u32 %s111, 1
        %s231 = smul.addr %s230, 4
        %s232 = scalar_lea.vmem [#allocation9], %s231
        %s233 = sadd.s32 %s28, %s29
        %s234 = smul.u32 2, %s233
        %s235 = sadd.s32 %s28, %s29
        %s236 = smul.u32 2, %s235
        %p237 = scmp.eq.s32.totalorder %s29, 0
        // Predicated region
        $region37: #{tpu_custom_call.1} parent=27 // pred_check
          %p238 = pneg %p237
        $region38: #{tpu_custom_call.1} parent=27 // pred_check_branch
          %240 = sbr.rel (%p238) target = $region40
        $region39: #{tpu_custom_call.1} parent=27 // pred_region
          %vm241 = vcmask 27648
          %242 = vst.msk [vmem:[#allocation2] sm:$0xf] %vm241, 0.0
          %243 = vst.msk [vmem:[#allocation3] sm:$0xf] %vm241, 0.0
        $region40: #{tpu_custom_call.1} parent=27 // pred_fallthru
          _
        %v244 = vld [vmem:[%s198] sm:$0xff]
        %v245 = vld [vmem:[%s207] sm:$0xff]
        %v246 = vld [vmem:[#allocation2] sm:$0xf]
        %v248 = vcombine.high %v244, %v244
        %250 = vmatprep.subr.mxu0 0.0
        %251 = vmatpush1.xpose.msra.mxu0 0.0
        %252 = vmatprep.subr.mxu0 0.0
        %253 = vmatpush1.xpose.msra.mxu0 0.0
        %254 = vmatprep.subr.mxu0 0.0
        %255 = vmatpush1.xpose.msra.mxu0 0.0
        %256 = vmatprep.subr.mxu0 0.0
        %257 = vmatpush1.xpose.msra.mxu0 0.0
        %258 = vmatprep.subr.mxu0 0.0
        %259 = vmatpush1.xpose.msra.mxu0 0.0
        %260 = vmatprep.subr.mxu0 0.0
        %261 = vmatpush1.xpose.msra.mxu0 0.0
        %262 = vmatprep.subr.mxu0 0.0
        %263 = vmatpush1.xpose.msra.mxu0 0.0
        %264 = vmatprep.subr.mxu0 0.0
        %265 = vmatpush1.xpose.msra.mxu0 0.0
        %266 = vmatprep.subr.mxu0 0.0
        %267 = vmatpush1.xpose.msra.mxu0 0.0
        %268 = vmatprep.subr.mxu0 0.0
        %269 = vmatpush1.xpose.msra.mxu0 0.0
        %270 = vmatprep.subr.mxu0 0.0
        %271 = vmatpush1.xpose.msra.mxu0 0.0
        %272 = vmatprep.subr.mxu0 0.0
        %273 = vmatpush1.xpose.msra.mxu0 0.0
        %274 = vmatprep.subr.mxu0 0.0
        %275 = vmatpush1.xpose.msra.mxu0 0.0
        %276 = vmatprep.subr.mxu0 0.0
        %277 = vmatpush1.xpose.msra.mxu0 0.0
        %278 = vmatprep.subr.mxu0 0.0
        %279 = vmatpush1.xpose.msra.mxu0 0.0
        %280 = vmatprep.subr.mxu0 %v248
        %281 = vmatpush1.xpose.msra.mxu0 %v244
        %282 = vmatprep.subr.mxu0 0.0
        %283 = vmatpush2.xpose.msra.mxu0 0.0
        %284 = vmatprep.subr.mxu0 0.0
        %285 = vmatpush2.xpose.msra.mxu0 0.0
        %286 = vmatprep.subr.mxu0 0.0
        %287 = vmatpush2.xpose.msra.mxu0 0.0
        %288 = vmatprep.subr.mxu0 0.0
        %289 = vmatpush2.xpose.msra.mxu0 0.0
        %290 = vmatprep.subr.mxu0 0.0
        %291 = vmatpush2.xpose.msra.mxu0 0.0
        %292 = vmatprep.subr.mxu0 0.0
        %293 = vmatpush2.xpose.msra.mxu0 0.0
        %294 = vmatprep.subr.mxu0 0.0
        %295 = vmatpush2.xpose.msra.mxu0 0.0
        %296 = vmatprep.subr.mxu0 0.0
        %297 = vmatpush2.xpose.msra.mxu0 0.0
        %298 = vmatprep.subr.mxu0 0.0
        %299 = vmatpush2.xpose.msra.mxu0 0.0
        %300 = vmatprep.subr.mxu0 0.0
        %301 = vmatpush2.xpose.msra.mxu0 0.0
        %302 = vmatprep.subr.mxu0 0.0
        %303 = vmatpush2.xpose.msra.mxu0 0.0
        %304 = vmatprep.subr.mxu0 0.0
        %305 = vmatpush2.xpose.msra.mxu0 0.0
        %306 = vmatprep.subr.mxu0 0.0
        %307 = vmatpush2.xpose.msra.mxu0 0.0
        %308 = vmatprep.subr.mxu0 0.0
        %309 = vmatpush2.xpose.msra.mxu0 0.0
        %310 = vmatprep.subr.mxu0 0.0
        %311 = vmatpush2.xpose.msra.mxu0 0.0
        %312 = vmatprep.subr.mxu0 0.0
        %313 = vmatpush2.xpose.msra.mxu0 0.0
        %314 = vmatprep.mubr.f32.mxu0 %v248
        %315 = vmatmul.mubr.f32.gmra.mxu0 %v244
        %v316 = vpop.f32.mrf.mxu0
        %v317 = vadd.f32 0.0, %v316
        %v318 = vpop.f32.mrf.mxu0
        %319 = vdwg.mxu0
        %v320 = vadd.f32 %v246, %v317
        %vm321 = vcmask 27648
        %322 = vst.msk [vmem:[#allocation2] sm:$0xf] %vm321, %v320
        %v323 = vld [vmem:[#allocation3] sm:$0xf]
        %v325 = vcombine.high %v245, %v245
        %327 = vmatprep.subr.mxu0 0.0
        %328 = vmatpush1.xpose.msra.mxu0 0.0
        %329 = vmatprep.subr.mxu0 0.0
        %330 = vmatpush1.xpose.msra.mxu0 0.0
        %331 = vmatprep.subr.mxu0 0.0
        %332 = vmatpush1.xpose.msra.mxu0 0.0
        %333 = vmatprep.subr.mxu0 0.0
        %334 = vmatpush1.xpose.msra.mxu0 0.0
        %335 = vmatprep.subr.mxu0 0.0
        %336 = vmatpush1.xpose.msra.mxu0 0.0
        %337 = vmatprep.subr.mxu0 0.0
        %338 = vmatpush1.xpose.msra.mxu0 0.0
        %339 = vmatprep.subr.mxu0 0.0
        %340 = vmatpush1.xpose.msra.mxu0 0.0
        %341 = vmatprep.subr.mxu0 0.0
        %342 = vmatpush1.xpose.msra.mxu0 0.0
        %343 = vmatprep.subr.mxu0 0.0
        %344 = vmatpush1.xpose.msra.mxu0 0.0
        %345 = vmatprep.subr.mxu0 0.0
        %346 = vmatpush1.xpose.msra.mxu0 0.0
        %347 = vmatprep.subr.mxu0 0.0
        %348 = vmatpush1.xpose.msra.mxu0 0.0
        %349 = vmatprep.subr.mxu0 0.0
        %350 = vmatpush1.xpose.msra.mxu0 0.0
        %351 = vmatprep.subr.mxu0 0.0
        %352 = vmatpush1.xpose.msra.mxu0 0.0
        %353 = vmatprep.subr.mxu0 0.0
        %354 = vmatpush1.xpose.msra.mxu0 0.0
        %355 = vmatprep.subr.mxu0 0.0
        %356 = vmatpush1.xpose.msra.mxu0 0.0
        %357 = vmatprep.subr.mxu0 %v325
        %358 = vmatpush1.xpose.msra.mxu0 %v245
        %359 = vmatprep.subr.mxu0 0.0
        %360 = vmatpush2.xpose.msra.mxu0 0.0
        %361 = vmatprep.subr.mxu0 0.0
        %362 = vmatpush2.xpose.msra.mxu0 0.0
        %363 = vmatprep.subr.mxu0 0.0
        %364 = vmatpush2.xpose.msra.mxu0 0.0
        %365 = vmatprep.subr.mxu0 0.0
        %366 = vmatpush2.xpose.msra.mxu0 0.0
        %367 = vmatprep.subr.mxu0 0.0
        %368 = vmatpush2.xpose.msra.mxu0 0.0
        %369 = vmatprep.subr.mxu0 0.0
        %370 = vmatpush2.xpose.msra.mxu0 0.0
        %371 = vmatprep.subr.mxu0 0.0
        %372 = vmatpush2.xpose.msra.mxu0 0.0
        %373 = vmatprep.subr.mxu0 0.0
        %374 = vmatpush2.xpose.msra.mxu0 0.0
        %375 = vmatprep.subr.mxu0 0.0
        %376 = vmatpush2.xpose.msra.mxu0 0.0
        %377 = vmatprep.subr.mxu0 0.0
        %378 = vmatpush2.xpose.msra.mxu0 0.0
        %379 = vmatprep.subr.mxu0 0.0
        %380 = vmatpush2.xpose.msra.mxu0 0.0
        %381 = vmatprep.subr.mxu0 0.0
        %382 = vmatpush2.xpose.msra.mxu0 0.0
        %383 = vmatprep.subr.mxu0 0.0
        %384 = vmatpush2.xpose.msra.mxu0 0.0
        %385 = vmatprep.subr.mxu0 0.0
        %386 = vmatpush2.xpose.msra.mxu0 0.0
        %387 = vmatprep.subr.mxu0 0.0
        %388 = vmatpush2.xpose.msra.mxu0 0.0
        %389 = vmatprep.subr.mxu0 0.0
        %390 = vmatpush2.xpose.msra.mxu0 0.0
        %391 = vmatprep.mubr.f32.mxu0 %v325
        %392 = vmatmul.mubr.f32.gmra.mxu0 %v245
        %v393 = vpop.f32.mrf.mxu0
        %v394 = vadd.f32 0.0, %v393
        %v395 = vpop.f32.mrf.mxu0
        %396 = vdwg.mxu0
        %v397 = vadd.f32 %v323, %v394
        %398 = vst.msk [vmem:[#allocation3] sm:$0xf] %vm321, %v397
        // Predicated region
        $region41: #{tpu_custom_call.1} parent=27 // pred_check
          %p399 = pneg %p237
        $region42: #{tpu_custom_call.1} parent=27 // pred_check_branch
          %401 = sbr.rel (%p399) target = $region44
        $region43: #{tpu_custom_call.1} parent=27 // pred_region
          %v402 = vld [vmem:[#allocation2] sm:$0xf]
          %v403 = vld [vmem:[#allocation3] sm:$0xf]
          %v404 = vsub.f32 %v402, %v403
          %405 = vst.msk [vmem:[%s232] sm:$0xf] %vm321, %v404
        $region44: #{tpu_custom_call.1} parent=27 // pred_fallthru
          _
        %s406 = sand.u32 %s111, 1
        %s407 = scalar_lea.sflag [#allocation6], %s406
        %s408 = sand.u32 %s111, 1
        %s409 = smul.addr %s408, 4
        %s410 = scalar_lea.vmem [#allocation9], %s409
        // Predicated region
        $region45: #{tpu_custom_call.1} parent=27 // pred_check
          %p411 = pneg %p121
        $region46: #{tpu_custom_call.1} parent=27 // pred_check_branch
          %413 = sbr.rel (%p411) target = $region48
        $region47: #{tpu_custom_call.1} parent=27 // pred_region
          %s415 = ssub.s32 64, 64
          %416 = vsyncadd %s407, %s415
          %s417 = sadd.s32 %s28, %s27
          %s418 = smul.addr %s417, 64
          %s419 = scalar_lea.hbm %s2, %s418
          %s421 = sshll.u32 %s410, 4
          %s422 = int_to_ptr.vmem [resolvable:$true] %s421
          %424 = dma.vmem_to_hbm [thread:$0]  %s422, 64, %s419, %s407
        $region48: #{tpu_custom_call.1} parent=27 // pred_fallthru
          _
      $region28: #{tpu_custom_call.1} parent=5 // pred_fallthru
        _
      %p425 = scmp.le.s32.totalorder 2, %s17
      // Predicated region
      $region49: #{tpu_custom_call.1} parent=5 // pred_check
        %p426 = pneg %p425
      $region50: #{tpu_custom_call.1} parent=5 // pred_check_branch
        %428 = sbr.rel (%p426) target = $region52
      $region51: #{tpu_custom_call.1} parent=5 // pred_region
        %s429 = ssub.s32 %s17, 2
        // Predicated region
        $region53: #{tpu_custom_call.1} parent=51 // pred_check
          %p430 = pneg %p127
        $region54: #{tpu_custom_call.1} parent=51 // pred_check_branch
          %432 = sbr.rel (%p430) target = $region56
        $region55: #{tpu_custom_call.1} parent=51 // pred_region
          %s433 = sand.u32 %s112, 1
          %s434 = scalar_lea.sflag [#allocation6], %s433
          %s435 = sand.u32 %s112, 1
          %s436 = smul.addr %s435, 4
          %s437 = scalar_lea.vmem [#allocation9], %s436
          %438 = dma.done %s434, 64
        $region56: #{tpu_custom_call.1} parent=51 // pred_fallthru
          _
      $region52: #{tpu_custom_call.1} parent=5 // pred_fallthru
        _
    $region6: #{tpu_custom_call.1} parent=1 // loop_footer
      %s21 = sadd.s32 1, %s17
    $region7: #{tpu_custom_call.1} parent=1 // loop_footer_branch
      %16 = sbr.rel target = $region3
    $region8: #{tpu_custom_call.1} parent=1 // loop_exit
      _
    %439 = vsyncpa [#allocation5], 1
    %s440 = scalar_lea.sflag [#allocation5], 1
    %441 = vsyncpa %s440, 1
    %442 = vsyncpa [#allocation8], 1
    %s443 = scalar_lea.sflag [#allocation8], 1
    %444 = vsyncpa %s443, 1
    %445 = vsyncpa [#allocation6], 1
    %s446 = scalar_lea.sflag [#allocation6], 1
    %447 = vsyncpa %s446, 1

</llo_original>
